<compile_context>
chip_gen: v6e
topology: v6e:2x2x1
jax: 0.10.0
libtpu: 0.0.40
codegen_flags: <defaults>
</compile_context>

<pallas_src>
import functools

import jax
import jax.numpy as jnp
from jax import lax
from jax.experimental import pallas as pl
from jax.experimental.pallas import tpu as pltpu


def _round_up(a, b):
    return (a + b - 1) // b * b


def _vmem_limit_bytes():
    """Generation-aware VMEM budget: ~3/4 of physical, capped, with a safe fallback."""
    limit = 48 * 1024 * 1024                      # fits v7x's 64 MiB physical VMEM per TC
    try:
        phys = int(pltpu.get_tpu_info().vmem_capacity_bytes)
        limit = min(max(phys * 3 // 4, limit), 112 * 1024 * 1024)
    except Exception:
        pass
    return limit


def _pick_batch_tile(batch):
    """Batch rows per grid step (this is the lane axis of the output block)."""
    cap = 512   # amortizes ~0.35us/grid-step overhead; per-tile VMEM cost stays tiny
    if batch <= 256:
        return 128
    # keep >= 2 grid steps so both v7x TensorCores get a balanced share of the batch
    half = _round_up((batch + 1) // 2, 128)
    return min(cap, half)


def _features_linear_onehot_kernel(idx_ref, table_ref, bias_ref, out_ref):
    """Small-vocab path: vectorized one-hot gather, lane-dense output.

    idx_ref  : VMEM (F, TB)  int32 -- this tile's indices (offsets folded), batch on lanes
    table_ref: VMEM (V, D)         -- full embedding table (grid-invariant)
    bias_ref : VMEM (D, 1)   f32
    out_ref  : VMEM (D, TB)  f32   -- batch on the 128-lane axis -> dense, unmasked stores
    """
    num_fields, tile = idx_ref.shape
    vocab, dim = table_ref.shape

    if pl.debug_checks_enabled():          # no-op unless pl.enable_debug_checks() (tests)
        idx = idx_ref[...]
        pl.debug_check(jnp.all((idx >= 0) & (idx < vocab)),
                       "FeaturesLinear: embedding index out of range")

    # counts[v, b] = #{f : idx[f, b] == v}; repeated indices get the right multiplicity.
    iota_v = lax.broadcasted_iota(jnp.int32, (vocab, tile), 0)
    counts = jnp.zeros((vocab, tile), jnp.float32)
    for f in range(num_fields):                                   # F is small & static
        counts = counts + (iota_v == idx_ref[f:f + 1, :]).astype(jnp.float32)

    # out[d, b] = sum_v table[v, d] * counts[v, b] + bias[d].
    # For the FM linear term D == 1, so the contraction is one exact-f32 multiply +
    # sublane reduction (XLU slot); an MXU matmul would waste >= 7/8 of each pass here
    # and truncate an f32 table to bf16 at default precision.  Wide embeddings should
    # instead use jnp.dot(table.T, counts) or the gather path.
    if dim == 1:
        w = table_ref[...].astype(jnp.float32)                        # (V, 1)
        acc = jnp.sum(w * counts, axis=0, keepdims=True)              # (1, TB)
    else:
        cols = []
        for j in range(dim):                                          # static, small
            w = table_ref[:, j:j + 1].astype(jnp.float32)             # (V, 1)
            cols.append(jnp.sum(w * counts, axis=0, keepdims=True))   # (1, TB)
        acc = jnp.concatenate(cols, axis=0)                           # (D, TB)

    out_ref[...] = (acc + bias_ref[...]).astype(out_ref.dtype)


_GATHER_GROUP = 8          # one full sublane group per store


def _features_linear_gather_kernel(idx_ref, table_ref, bias_ref, out_ref, *,
                                   num_fields, group=_GATHER_GROUP):
    """Large-vocab path: grouped gather-and-sum over a VMEM-resident table.

    idx_ref  : SMEM (1, TB*F) int32 -- this tile's indices (offsets folded)
    table_ref: VMEM (V, D)          -- grid-invariant, single-buffered (pl.Buffered(1))
    bias_ref : VMEM (1, D)    f32
    out_ref  : VMEM (TB, D)   f32
    """
    tile_rows, _ = out_ref.shape
    bias = bias_ref[...]                               # (1, D) f32; hoisted out of the loop

    def body(g, carry):
        row0 = pl.multiple_of(g * group, group)
        rows = []
        for r in range(group):                         # static -> fully unrolled
            acc = bias
            for f in range(num_fields):                # static -> fully unrolled
                gidx = idx_ref[0, (row0 + r) * num_fields + f]        # free SMEM scalar read
                acc = acc + table_ref[pl.ds(gidx, 1), :].astype(jnp.float32)
            rows.append(acc)
        # one (group, D) store per iteration instead of `group` single-row masked stores
        out_ref[pl.ds(row0, group), :] = jnp.concatenate(rows, axis=0).astype(out_ref.dtype)
        return carry

    # Partial unroll: trip count (TB/8) is static and small; unrolling amortizes the loop
    # branch / address math (measured ~35% loss from un-unrolled short fori_loops).
    lax.fori_loop(0, tile_rows // group, body, 0, unroll=8)


def features_linear(x, offsets, table, bias, *, batch_tile=None, onehot_max_vocab=4096):
    """x: (B, F) int; offsets: (F,) int; table: (V, D); bias: (D,) -> (B, D) float32."""
    batch, num_fields = x.shape
    vocab, dim = table.shape

    # Fold per-field offsets into the indices (one tiny XLA add outside the kernel).
    gidx = x.astype(jnp.int32) + offsets.astype(jnp.int32)[None, :]          # (B, F)

    tb = _pick_batch_tile(batch) if batch_tile is None else batch_tile
    tb = max(128, _round_up(tb, 128))              # output lane axis -> multiple of 128
    b_pad = _round_up(max(batch, 1), tb)
    n_tiles = b_pad // tb
    if b_pad != batch:
        # Padded rows gather index 0 (always valid, V >= 1); they are sliced away below.
        gidx = jnp.pad(gidx, ((0, b_pad - batch), (0, 0)))

    params = pltpu.CompilerParams(
        # The batch axis is embarrassingly parallel: it pipelines and shards across the
        # two v7x TensorCores (the table is replicated into each core's VMEM).
        dimension_semantics=("parallel",),
        vmem_limit_bytes=_vmem_limit_bytes(),
    )

    if vocab <= onehot_max_vocab and dim <= 16:
        # ------- small-vocab fast path: one-hot counts, lane-dense (D, TB) output -------
        out = pl.pallas_call(
            _features_linear_onehot_kernel,
            out_shape=jax.ShapeDtypeStruct((dim, b_pad), jnp.float32),
            grid=(n_tiles,),
            in_specs=[
                pl.BlockSpec((num_fields, tb), lambda i: (0, i)),    # per-tile indices
                pl.BlockSpec((vocab, dim), lambda i: (0, 0)),        # table (tiny, invariant)
                pl.BlockSpec((dim, 1), lambda i: (0, 0)),            # bias
            ],
            out_specs=pl.BlockSpec((dim, tb), lambda i: (0, i)),     # batch on the lane axis
            compiler_params=params,
        )(gidx.T, table, bias.astype(jnp.float32).reshape(dim, 1))
        return out[:, :batch].T                                      # back to (B, D)

    # ---------- large-vocab path: grouped gather over a VMEM-resident table ----------
    # TODO(synk): when V*D does not fit VMEM, keep the table in HBM (memory_space=pl.ANY)
    # and row-gather with pltpu.make_async_copy + manual double-buffering instead.
    out = pl.pallas_call(
        functools.partial(_features_linear_gather_kernel, num_fields=num_fields),
        out_shape=jax.ShapeDtypeStruct((b_pad, dim), jnp.float32),
        grid=(n_tiles,),
        in_specs=[
            # Per-tile index block in SMEM: bounds SMEM to ~TB*F words per buffer and
            # pipelines the index DMA with compute (no whole-array scalar prefetch).
            pl.BlockSpec((1, tb * num_fields), lambda i: (i, 0),
                         memory_space=pltpu.MemorySpace.SMEM),
            # Grid-invariant table: single-buffered (halves its VMEM footprint; matters
            # most under v7x's 64 MiB/TC) and kept in its input dtype (bf16 stays bf16).
            pl.BlockSpec((vocab, dim), lambda i: (0, 0), pipeline_mode=pl.Buffered(1)),
            pl.BlockSpec((1, dim), lambda i: (0, 0)),
        ],
        out_specs=pl.BlockSpec((tb, dim), lambda i: (i, 0)),
        compiler_params=params,
    )(gidx.reshape(n_tiles, tb * num_fields), table,
      bias.astype(jnp.float32).reshape(1, dim))
    return out[:batch]


if __name__ == "__main__":
    # Module configuration (small, synthetic)
    field_dims = (3, 5, 7, 9)          # num_fields = 4, vocab = sum = 24
    output_dim = 1
    vocab = sum(field_dims)
    num_fields = len(field_dims)
    batch = 2

    key = jax.random.PRNGKey(0)
    k_table, k_x = jax.random.split(key)

    # torch.nn.Embedding default init is N(0, 1); bias starts at zeros.
    table = jax.random.normal(k_table, (vocab, output_dim), dtype=jnp.float32)
    bias = jnp.zeros((output_dim,), dtype=jnp.float32)

    # offsets = (0, cumsum(field_dims)[:-1])
    offsets = jnp.array(
        [0] + list(jnp.cumsum(jnp.array(field_dims))[:-1]), dtype=jnp.int32
    )

    # Per-field categorical indices in [0, field_dims[f])
    x = jnp.stack(
        [
            jax.random.randint(jax.random.fold_in(k_x, f), (batch,), 0, field_dims[f])
            for f in range(num_fields)
        ],
        axis=1,
    ).astype(jnp.int32)                                  # (batch, num_fields)

    out = features_linear(x, offsets, table, bias)
    out = jax.block_until_ready(out)

    # Pure-JAX reference: embedding lookup + sum over fields + bias
    ref = jnp.sum(jnp.take(table, x + offsets[None, :], axis=0), axis=1) + bias
    assert out.shape == (batch, output_dim)
    assert jnp.allclose(out, ref, atol=1e-5, rtol=1e-5)

    print("KERNEL_OK")
</pallas_src>

<mosaic_0001>
module attributes {stable_mosaic.version = 11 : i64} {
  func.func @_features_linear_onehot_kernel(%arg0: i32, %arg1: memref<4x128xi32, #tpu.memory_space<vmem>>, %arg2: memref<24x1xf32, #tpu.memory_space<vmem>>, %arg3: memref<1x1xf32, #tpu.memory_space<vmem>>, %arg4: memref<1x128xf32, #tpu.memory_space<vmem>>) attributes {dimension_semantics = [#tpu.dimension_semantics<parallel>], iteration_bounds = array<i64: 1>, scalar_prefetch = 0 : i64, scratch_operands = 0 : i64, tpu.core_type = #tpu.core_type<tc>, window_params = [{transform_indices = @transform_0, window_bounds = array<i64: 4, 128>}, {pipeline_mode = #tpu.pipeline_mode<synchronous>, transform_indices = @transform_1, window_bounds = array<i64: 24, 1>}, {pipeline_mode = #tpu.pipeline_mode<synchronous>, transform_indices = @transform_2, window_bounds = array<i64: 1, 1>}, {transform_indices = @transform_3, window_bounds = array<i64: 1, 128>}]} {
    %0 = tpu.iota {dimensions = array<i32: 0>} : vector<24x128xi32>
    %cst = arith.constant 0.000000e+00 : f32
    %1 = vector.broadcast %cst : f32 to vector<24x128xf32>
    %c0 = arith.constant 0 : index
    %c0_0 = arith.constant 0 : index
    %2 = vector.load %arg1[%c0, %c0_0] : memref<4x128xi32, #tpu.memory_space<vmem>>, vector<1x128xi32>
    %3 = vector.broadcast %2 : vector<1x128xi32> to vector<24x128xi32>
    %4 = arith.cmpi eq, %0, %3 : vector<24x128xi32>
    %5 = arith.extui %4 : vector<24x128xi1> to vector<24x128xi32>
    %6 = arith.sitofp %5 : vector<24x128xi32> to vector<24x128xf32>
    %7 = arith.addf %1, %6 : vector<24x128xf32>
    %c1 = arith.constant 1 : index
    %c0_1 = arith.constant 0 : index
    %8 = vector.load %arg1[%c1, %c0_1] : memref<4x128xi32, #tpu.memory_space<vmem>>, vector<1x128xi32>
    %9 = vector.broadcast %8 : vector<1x128xi32> to vector<24x128xi32>
    %10 = arith.cmpi eq, %0, %9 : vector<24x128xi32>
    %11 = arith.extui %10 : vector<24x128xi1> to vector<24x128xi32>
    %12 = arith.sitofp %11 : vector<24x128xi32> to vector<24x128xf32>
    %13 = arith.addf %7, %12 : vector<24x128xf32>
    %c2 = arith.constant 2 : index
    %c0_2 = arith.constant 0 : index
    %14 = vector.load %arg1[%c2, %c0_2] : memref<4x128xi32, #tpu.memory_space<vmem>>, vector<1x128xi32>
    %15 = vector.broadcast %14 : vector<1x128xi32> to vector<24x128xi32>
    %16 = arith.cmpi eq, %0, %15 : vector<24x128xi32>
    %17 = arith.extui %16 : vector<24x128xi1> to vector<24x128xi32>
    %18 = arith.sitofp %17 : vector<24x128xi32> to vector<24x128xf32>
    %19 = arith.addf %13, %18 : vector<24x128xf32>
    %c3 = arith.constant 3 : index
    %c0_3 = arith.constant 0 : index
    %20 = vector.load %arg1[%c3, %c0_3] : memref<4x128xi32, #tpu.memory_space<vmem>>, vector<1x128xi32>
    %21 = vector.broadcast %20 : vector<1x128xi32> to vector<24x128xi32>
    %22 = arith.cmpi eq, %0, %21 : vector<24x128xi32>
    %23 = arith.extui %22 : vector<24x128xi1> to vector<24x128xi32>
    %24 = arith.sitofp %23 : vector<24x128xi32> to vector<24x128xf32>
    %25 = arith.addf %19, %24 : vector<24x128xf32>
    %c0_4 = arith.constant 0 : index
    %c0_5 = arith.constant 0 : index
    %26 = vector.load %arg2[%c0_4, %c0_5] : memref<24x1xf32, #tpu.memory_space<vmem>>, vector<24x1xf32>
    %27 = vector.broadcast %26 : vector<24x1xf32> to vector<24x128xf32>
    %28 = arith.mulf %27, %25 : vector<24x128xf32>
    %cst_6 = arith.constant dense<0.000000e+00> : vector<128xf32>
    %29 = vector.multi_reduction <add>, %28, %cst_6 [0] : vector<24x128xf32> to vector<128xf32>
    %30 = vector.shape_cast %29 : vector<128xf32> to vector<1x128xf32>
    %c0_7 = arith.constant 0 : index
    %c0_8 = arith.constant 0 : index
    %31 = vector.load %arg3[%c0_7, %c0_8] : memref<1x1xf32, #tpu.memory_space<vmem>>, vector<1x1xf32>
    %32 = vector.broadcast %31 : vector<1x1xf32> to vector<1x128xf32>
    %33 = arith.addf %30, %32 : vector<1x128xf32>
    %c0_9 = arith.constant 0 : index
    %c0_10 = arith.constant 0 : index
    %34 = vector.load %arg4[%c0_9, %c0_10] : memref<1x128xf32, #tpu.memory_space<vmem>>, vector<1x128xf32>
    tpu.vector_store %arg4[%c0_9, %c0_10], %33 {strides = array<i32>} : memref<1x128xf32, #tpu.memory_space<vmem>>, vector<1x128xf32>,
    return
  }
  func.func @transform_0(%arg0: i32) -> (i32, i32) {
    %c0_i32 = arith.constant 0 : i32
    %c0_i32_0 = arith.constant 0 : i32
    return %c0_i32, %arg0 : i32, i32
  }
  func.func @transform_1(%arg0: i32) -> (i32, i32) {
    %c0_i32 = arith.constant 0 : i32
    %c0_i32_0 = arith.constant 0 : i32
    %c0_i32_1 = arith.constant 0 : i32
    return %c0_i32, %c0_i32_0 : i32, i32
  }
  func.func @transform_2(%arg0: i32) -> (i32, i32) {
    %c0_i32 = arith.constant 0 : i32
    %c0_i32_0 = arith.constant 0 : i32
    %c0_i32_1 = arith.constant 0 : i32
    return %c0_i32, %c0_i32_0 : i32, i32
  }
  func.func @transform_3(%arg0: i32) -> (i32, i32) {
    %c0_i32 = arith.constant 0 : i32
    %c0_i32_0 = arith.constant 0 : i32
    return %c0_i32, %arg0 : i32, i32
  }
}

</mosaic_0001>

<llo_original>
// kernel: tpu_custom_call.1
$region0: #{tpu_custom_call.1}
  #allocation0 [shape = 'u32[]', space=smem, size = 0x4, offset = 0x4, fixed_abs, tag = 'smem constant byte address 0x4 - core index']
  #allocation1 [shape = 'u32[144,128]{1,0:T(1,128)}', space=vmem, size = 0x12000, scoped, tag = 'internal scratch']
  #allocation2 [shape = 'f32[1,1]{1,0:T(1,128)S(1)}', space=vmem, size = 0x200, scoped, tag = 'scoped memory for tpu_custom_call.1']
  %s0 = inlined_call_operand.vmem [shape: s32[4,128], index: 0, kind: input, shape index: {}]
  %s1 = inlined_call_operand.vmem [shape: f32[24,1], index: 1, kind: input, shape index: {}]
  %s2 = inlined_call_operand.<no memory space> [shape: f32[1,1], index: 2, kind: input, shape index: {}]
  %s3 = inlined_call_operand.hbm [shape: f32[1,128], index: 3, kind: output, shape index: {}]
  %s4 = sld [smem:[#allocation0]]
  $region22: #{tpu_custom_call.1} parent=0
    _
  %s6 = ssub.s32 1, %s4
  %s7 = scalar_select 0, %s6, %s4
  %v8 = vstv %s2
  %9 = vst [vmem:[#allocation2] sm:$0x1] %v8
  $region1: #{tpu_custom_call.1} parent=0
    #allocation3 [shape = 'u8[512]{0}', space=vmem, size = 0x400, scoped, tag = 'output window, operand 0, single buffered']
    #allocation4 [shape = 's32[1]{0}', space=sflag, size = 0x4, scoped, tag = 'scoped memory for tpu_custom_call.1']
    %10 = vsyncpa [#allocation4], 0
    // Predicated region
    $region2: #{tpu_custom_call.1} parent=1 // pred_check
      _
    $region3: #{tpu_custom_call.1} parent=1 // pred_check_branch
      %12 = sbr.rel (0) target = $region5
    $region4: #{tpu_custom_call.1} parent=1 // pred_region
      _
    $region5: #{tpu_custom_call.1} parent=1 // pred_fallthru
      _
    // Predicated region
    $region6: #{tpu_custom_call.1} parent=1 // pred_check
      _
    $region7: #{tpu_custom_call.1} parent=1 // pred_check_branch
      %14 = sbr.rel (0) target = $region9
    $region8: #{tpu_custom_call.1} parent=1 // pred_region
      _
    $region9: #{tpu_custom_call.1} parent=1 // pred_fallthru
      _
    // Predicated region
    $region10: #{tpu_custom_call.1} parent=1 // pred_check
      _
    $region11: #{tpu_custom_call.1} parent=1 // pred_check_branch
      %16 = sbr.rel (0) target = $region13
    $region12: #{tpu_custom_call.1} parent=1 // pred_region
      _
    $region13: #{tpu_custom_call.1} parent=1 // pred_fallthru
      _
    %v17 = vlaneseq
    %v18 = vshrl.u32 %v17, 7
    %v19 = vadd.s32 %v18, 8
    %v20 = vadd.s32 %v18, 16
    %v21 = vld [vmem:[%s0] sm:$0x1]
    %v22 = vlaneseq
    %v23 = vshrl.u32 %v22, 7
    %v24 = vsub.s32 0, %v23
    %v25 = vrot.slane %v21, %v24
    %vm26 = vcmp.eq.s32.totalorder %v18, %v25
    %vm27 = vcmp.eq.s32.totalorder %v19, %v25
    %vm28 = vcmp.eq.s32.totalorder %v20, %v25
    %v29 = vsel %vm26, 1, 0
    %v30 = vsel %vm27, 1, 0
    %v31 = vsel %vm28, 1, 0
    %v32 = vcvt.s32.f32 %v29
    %v33 = vcvt.s32.f32 %v30
    %v34 = vcvt.s32.f32 %v31
    %v35 = vadd.f32 %v32, 0.0
    %v36 = vadd.f32 %v33, 0.0
    %v37 = vadd.f32 %v34, 0.0
    %v38 = vld [vmem:[%s0 + $0x1] sm:$0x1]
    %v39 = vlaneseq
    %v40 = vshrl.u32 %v39, 7
    %v41 = vsub.s32 0, %v40
    %v42 = vrot.slane %v38, %v41
    %vm43 = vcmp.eq.s32.totalorder %v18, %v42
    %vm44 = vcmp.eq.s32.totalorder %v19, %v42
    %vm45 = vcmp.eq.s32.totalorder %v20, %v42
    %v46 = vsel %vm43, 1, 0
    %v47 = vsel %vm44, 1, 0
    %v48 = vsel %vm45, 1, 0
    %v49 = vcvt.s32.f32 %v46
    %v50 = vcvt.s32.f32 %v47
    %v51 = vcvt.s32.f32 %v48
    %v52 = vadd.f32 %v35, %v49
    %v53 = vadd.f32 %v36, %v50
    %v54 = vadd.f32 %v37, %v51
    %v55 = vld [vmem:[%s0 + $0x2] sm:$0x1]
    %v56 = vlaneseq
    %v57 = vshrl.u32 %v56, 7
    %v58 = vsub.s32 0, %v57
    %v59 = vrot.slane %v55, %v58
    %vm60 = vcmp.eq.s32.totalorder %v18, %v59
    %vm61 = vcmp.eq.s32.totalorder %v19, %v59
    %vm62 = vcmp.eq.s32.totalorder %v20, %v59
    %v63 = vsel %vm60, 1, 0
    %v64 = vsel %vm61, 1, 0
    %v65 = vsel %vm62, 1, 0
    %v66 = vcvt.s32.f32 %v63
    %v67 = vcvt.s32.f32 %v64
    %v68 = vcvt.s32.f32 %v65
    %v69 = vadd.f32 %v52, %v66
    %v70 = vadd.f32 %v53, %v67
    %v71 = vadd.f32 %v54, %v68
    %v72 = vld [vmem:[%s0 + $0x3] sm:$0x1]
    %v73 = vlaneseq
    %v74 = vshrl.u32 %v73, 7
    %v75 = vsub.s32 0, %v74
    %v76 = vrot.slane %v72, %v75
    %vm77 = vcmp.eq.s32.totalorder %v18, %v76
    %vm78 = vcmp.eq.s32.totalorder %v19, %v76
    %vm79 = vcmp.eq.s32.totalorder %v20, %v76
    %v80 = vsel %vm77, 1, 0
    %v81 = vsel %vm78, 1, 0
    %v82 = vsel %vm79, 1, 0
    %v83 = vcvt.s32.f32 %v80
    %v84 = vcvt.s32.f32 %v81
    %v85 = vcvt.s32.f32 %v82
    %v86 = vadd.f32 %v69, %v83
    %v87 = vadd.f32 %v70, %v84
    %v88 = vadd.f32 %v71, %v85
    %v89 = vld [vmem:[%s1] sm:$0xff]
    %v90 = vld [vmem:[%s1 + $0x8] sm:$0xff]
    %v91 = vld [vmem:[%s1 + $0x10] sm:$0xff]
    %93 = vset.pattern.permute.xlu0 0
    %94 = vperm.xlu0 %93, %v89
    %v95 = vpop.permute.xlu0 %94
    %98 = vset.pattern.permute.xlu0 0
    %99 = vperm.xlu0 %98, %v90
    %v100 = vpop.permute.xlu0 %99
    %103 = vset.pattern.permute.xlu0 0
    %104 = vperm.xlu0 %103, %v91
    %v105 = vpop.permute.xlu0 %104
    %v107 = vmul.f32 %v95, %v86
    %v108 = vmul.f32 %v100, %v87
    %v109 = vmul.f32 %v105, %v88
    %v110 = vadd.f32 %v107, %v108
    %v111 = vadd.f32 %v110, %v109
    %v112 = vrot.slane %v111, 4
    %v113 = vadd.f32 %v111, %v112
    %v114 = vrot.slane %v113, 2
    %v115 = vadd.f32 %v113, %v114
    %v116 = vrot.slane %v115, 1
    %v117 = vadd.f32 %v115, %v116
    %v118 = vld [vmem:[#allocation2] sm:$0x1]
    %120 = vset.pattern.permute.xlu0 0
    %121 = vperm.xlu0 %120, %v118
    %v122 = vpop.permute.xlu0 %121
    %v124 = vlaneseq
    %v125 = vshrl.u32 %v124, 7
    %v126 = vsub.s32 0, %v125
    %v127 = vrot.slane %v122, %v126
    %v128 = vadd.f32 %v117, %v127
    %129 = vst [vmem:[#allocation3] sm:$0x1] %v128
    // Predicated region
    $region14: #{tpu_custom_call.1} parent=1 // pred_check
      _
    $region15: #{tpu_custom_call.1} parent=1 // pred_check_branch
      %131 = sbr.rel (0) target = $region17
    $region16: #{tpu_custom_call.1} parent=1 // pred_region
      %s133 = ssub.s32 16, 16
      %134 = vsyncadd [#allocation4], %s133
      %s136 = sshll.u32 [#allocation3], 4
      %s137 = int_to_ptr.vmem [resolvable:$true] %s136
      %139 = dma.vmem_to_hbm [thread:$0]  %s137, 16, %s3, [#allocation4]
    $region17: #{tpu_custom_call.1} parent=1 // pred_fallthru
      _
    // Predicated region
    $region18: #{tpu_custom_call.1} parent=1 // pred_check
      _
    $region19: #{tpu_custom_call.1} parent=1 // pred_check_branch
      %141 = sbr.rel (0) target = $region21
    $region20: #{tpu_custom_call.1} parent=1 // pred_region
      %142 = dma.done [#allocation4], 16
    $region21: #{tpu_custom_call.1} parent=1 // pred_fallthru
      _
    %143 = vsyncpa [#allocation4], 1

</llo_original>
